<compile_context>
chip_gen: v7x
topology: tpu7x:2x2x1
jax: 0.10.0
libtpu: 0.0.40
codegen_flags: <defaults>
</compile_context>

<pallas_src>
import functools

import jax
import jax.numpy as jnp
import numpy as np
from jax.experimental import pallas as pl
from jax.experimental.pallas import tpu as pltpu


def c2_group_infonce_kernel(e1_ref, e2_ref, part_ref, *, tau):
    """Per-block InfoNCE partials for C2_Metric_Learning.

    e1_ref, e2_ref: (GB, K, D) blocks of embeddings; row [g, 0, :] is the
                    anchor of group g (K = num_neg + 1).
    part_ref:       (GB, 1) per-group  log(denom_g) - <a1_g, a2_g>/tau.
    """
    f32 = jnp.float32
    e1 = e1_ref[...].astype(f32)                       # (GB, K, D)
    e2 = e2_ref[...].astype(f32)

    # --- row-wise L2 normalization: x * rsqrt(sum(x^2) + eps^2) -----------
    # Single EUP rsqrt per row; the (GB, K, D) tile only sees multiplies.
    e1n = e1 * jax.lax.rsqrt(jnp.sum(e1 * e1, axis=-1, keepdims=True) + 1e-18)
    e2n = e2 * jax.lax.rsqrt(jnp.sum(e2 * e2, axis=-1, keepdims=True) + 1e-18)

    # --- anchors: static sublane-0 slice of each group (no mask matmuls) --
    a1 = e1n[:, 0:1, :]                                # (GB, 1, D)
    a2 = e2n[:, 0:1, :]

    # --- similarities to own-group anchor, element-wise (no (N,B) matrices)
    s1 = jnp.sum(e1n * a2, axis=-1)                    # (GB, K)  == sum_1
    s2 = jnp.sum(e2n * a1, axis=-1)                    # (GB, K)  == sum_2

    # --- InfoNCE in log domain ---------------------------------------------
    inv_tau = 1.0 / tau
    ex1 = jnp.exp(s1 * inv_tau)                        # (GB, K)
    ex2 = jnp.exp(s2 * inv_tau)                        # (GB, K)
    # denom_b = sum_k exp(sum_2/tau) + sum_{k>=1} exp(sum_1/tau)
    denom = (jnp.sum(ex2, axis=-1, keepdims=True)
             + jnp.sum(ex1, axis=-1, keepdims=True)
             - ex1[:, 0:1])                            # (GB, 1)
    anc_logit = s2[:, 0:1] * inv_tau                   # (GB, 1) = <a1,a2>/tau

    # loss contribution of group b: log(denom_b) - anc_logit_b
    part_ref[...] = jnp.log(denom) - anc_logit


def c2_metric_learning_loss(query_embed1, query_embed2, *, batch_size, num_neg,
                            tau, groups_per_block=None):
    """Pallas wrapper.

    query_embed{1,2}: (N, D) embeddings with N = batch_size * (num_neg + 1),
    rows i = b*K + k; row b*K is the anchor of group b (row-major, so the
    reshape to (batch, K, D) below is metadata-only, exactly like torch.view).
    """
    K = num_neg + 1
    N = batch_size * K
    D = query_embed1.shape[-1]
    assert query_embed1.shape == (N, D) and query_embed2.shape == (N, D)

    if groups_per_block is None:
        groups_per_block = batch_size                  # single block
    GB = groups_per_block
    assert batch_size % GB == 0, "groups_per_block must divide batch_size"
    num_blocks = batch_size // GB

    q1 = query_embed1.reshape(batch_size, K, D)
    q2 = query_embed2.reshape(batch_size, K, D)

    itemsize = jnp.dtype(query_embed1.dtype).itemsize
    cost = pl.CostEstimate(
        flops=int(12 * N * D),                         # norms + 2 dots + scaling
        transcendentals=int(4 * N + batch_size),       # rsqrt + exp + log
        bytes_accessed=int(2 * N * D * itemsize + batch_size * 4),
    )

    kernel = functools.partial(c2_group_infonce_kernel, tau=tau)
    parts = pl.pallas_call(
        kernel,
        out_shape=jax.ShapeDtypeStruct((batch_size, 1), jnp.float32),
        grid=(num_blocks,),
        in_specs=[pl.BlockSpec((GB, K, D), lambda g: (g, 0, 0)),
                  pl.BlockSpec((GB, K, D), lambda g: (g, 0, 0))],
        out_specs=pl.BlockSpec((GB, 1), lambda g: (g, 0)),
        compiler_params=pltpu.CompilerParams(dimension_semantics=("parallel",)),
        cost_estimate=cost,
    )(q1, q2)

    # loss = -mean_b log(num_b / denom_b) = mean_b [log(denom_b) - anc_logit_b]
    return jnp.mean(parts)


def _reference_loss(q1, q2, batch_size, num_neg, tau):
    """Plain-JAX reference mirroring the PyTorch forward (f32 compute)."""
    q1 = q1.astype(jnp.float32)
    q2 = q2.astype(jnp.float32)
    K = num_neg + 1
    D = q1.shape[-1]
    q1 = q1 / (jnp.linalg.norm(q1, axis=1, keepdims=True) + 1e-9)
    q2 = q2 / (jnp.linalg.norm(q2, axis=1, keepdims=True) + 1e-9)
    q1 = q1.reshape(batch_size, K, D)
    q2 = q2.reshape(batch_size, K, D)
    src_anchor = q1[:, 0, :][:, None, :]
    trg_anchor = q2[:, 0, :][:, None, :]
    sum_1 = jnp.sum(q1 * trg_anchor, axis=-1)
    sum_2 = jnp.sum(q2 * src_anchor, axis=-1)
    sum_3 = jnp.exp(jnp.concatenate([sum_2, sum_1[:, 1:]], axis=-1) / tau)
    return -jnp.mean(jnp.log(sum_3[:, 0] / jnp.sum(sum_3, axis=1)))


if __name__ == "__main__":
    # Small, module-consistent shapes (production: batch=50, num_neg=10, D=768,
    # groups_per_block=25 -> grid=(2,) so both v7x TensorCores are used).
    batch_size = 16
    num_neg = 3
    K = num_neg + 1
    N = batch_size * K                 # (num_neg + 1) * batch_size
    seq = 8
    hidden = 128                       # encoder hidden / embedding size (lane-dense)
    tau = 0.1
    groups_per_block = 8               # grid=(2,), parallel over group-blocks

    key = jax.random.PRNGKey(0)
    k1, k2 = jax.random.split(key)

    # TODO(synk): the external mBERT encoder (and its AdamW optimizer) cannot be
    # reproduced here; synthetic `last_hidden_state` tensors stand in for its output.
    last_hidden_state1 = jax.random.normal(k1, (N, seq, hidden), dtype=jnp.float32)
    last_hidden_state2 = jax.random.normal(k2, (N, seq, hidden), dtype=jnp.float32)

    # mBERT_pairwise aggregation ('cls' mode): take the first token.
    query_embed1 = last_hidden_state1[:, 0, :]
    query_embed2 = last_hidden_state2[:, 0, :]

    # Repeat / truncate to N rows (glue, mirrors the module; already exact here).
    def fit_to_N(q, n):
        if q.shape[0] > n:
            return q[:n]
        if q.shape[0] < n:
            r = int(np.ceil(n / q.shape[0]))
            return jnp.tile(q, (r, 1))[:n]
        return q

    query_embed1 = fit_to_N(query_embed1, N)
    query_embed2 = fit_to_N(query_embed2, N)

    # Embeddings cross the pallas_call boundary in bf16 (mirrors @autocast()
    # mixed precision and halves input DMA bytes); kernel upcasts to f32.
    query_embed1 = query_embed1.astype(jnp.bfloat16)
    query_embed2 = query_embed2.astype(jnp.bfloat16)

    loss = c2_metric_learning_loss(
        query_embed1, query_embed2,
        batch_size=batch_size, num_neg=num_neg, tau=tau,
        groups_per_block=groups_per_block,
    )
    jax.block_until_ready(loss)

    ref = _reference_loss(query_embed1, query_embed2, batch_size, num_neg, tau)
    np.testing.assert_allclose(np.asarray(loss), np.asarray(ref), rtol=1e-3, atol=1e-3)

    print("KERNEL_OK")
</pallas_src>

<mosaic_0001>
module attributes {stable_mosaic.version = 11 : i64} {
  func.func @c2_group_infonce_kernel(%arg0: i32, %arg1: memref<8x4x128xbf16, #tpu.memory_space<vmem>>, %arg2: memref<8x4x128xbf16, #tpu.memory_space<vmem>>, %arg3: memref<8x1xf32, #tpu.memory_space<vmem>>) attributes {dimension_semantics = [#tpu.dimension_semantics<parallel>], iteration_bounds = array<i64: 2>, scalar_prefetch = 0 : i64, scratch_operands = 0 : i64, tpu.core_type = #tpu.core_type<tc>, window_params = [{transform_indices = @transform_0, window_bounds = array<i64: 8, 4, 128>}, {transform_indices = @transform_1, window_bounds = array<i64: 8, 4, 128>}, {transform_indices = @transform_2, window_bounds = array<i64: 8, 1>}]} {
    %c0 = arith.constant 0 : index
    %c0_0 = arith.constant 0 : index
    %c0_1 = arith.constant 0 : index
    %0 = vector.load %arg1[%c0, %c0_0, %c0_1] : memref<8x4x128xbf16, #tpu.memory_space<vmem>>, vector<8x4x128xbf16>
    %1 = arith.extf %0 : vector<8x4x128xbf16> to vector<8x4x128xf32>
    %c0_2 = arith.constant 0 : index
    %c0_3 = arith.constant 0 : index
    %c0_4 = arith.constant 0 : index
    %2 = vector.load %arg2[%c0_2, %c0_3, %c0_4] : memref<8x4x128xbf16, #tpu.memory_space<vmem>>, vector<8x4x128xbf16>
    %3 = arith.extf %2 : vector<8x4x128xbf16> to vector<8x4x128xf32>
    %4 = arith.mulf %1, %1 : vector<8x4x128xf32>
    %cst = arith.constant dense<0.000000e+00> : vector<8x4xf32>
    %5 = vector.multi_reduction <add>, %4, %cst [2] : vector<8x4x128xf32> to vector<8x4xf32>
    %6 = vector.shape_cast %5 : vector<8x4xf32> to vector<8x4x1xf32>
    %cst_5 = arith.constant 1.000000e-18 : f32
    %7 = vector.broadcast %cst_5 : f32 to vector<8x4x1xf32>
    %8 = arith.addf %6, %7 : vector<8x4x1xf32>
    %9 = math.rsqrt %8 : vector<8x4x1xf32>
    %10 = vector.broadcast %9 : vector<8x4x1xf32> to vector<8x4x128xf32>
    %11 = arith.mulf %1, %10 : vector<8x4x128xf32>
    %12 = arith.mulf %3, %3 : vector<8x4x128xf32>
    %cst_6 = arith.constant dense<0.000000e+00> : vector<8x4xf32>
    %13 = vector.multi_reduction <add>, %12, %cst_6 [2] : vector<8x4x128xf32> to vector<8x4xf32>
    %14 = vector.shape_cast %13 : vector<8x4xf32> to vector<8x4x1xf32>
    %cst_7 = arith.constant 1.000000e-18 : f32
    %15 = vector.broadcast %cst_7 : f32 to vector<8x4x1xf32>
    %16 = arith.addf %14, %15 : vector<8x4x1xf32>
    %17 = math.rsqrt %16 : vector<8x4x1xf32>
    %18 = vector.broadcast %17 : vector<8x4x1xf32> to vector<8x4x128xf32>
    %19 = arith.mulf %3, %18 : vector<8x4x128xf32>
    %20 = vector.extract_strided_slice %11 {offsets = [0, 0, 0], sizes = [8, 1, 128], strides = [1, 1, 1]} : vector<8x4x128xf32> to vector<8x1x128xf32>
    %21 = vector.extract_strided_slice %19 {offsets = [0, 0, 0], sizes = [8, 1, 128], strides = [1, 1, 1]} : vector<8x4x128xf32> to vector<8x1x128xf32>
    %22 = vector.broadcast %21 : vector<8x1x128xf32> to vector<8x4x128xf32>
    %23 = arith.mulf %11, %22 : vector<8x4x128xf32>
    %cst_8 = arith.constant dense<0.000000e+00> : vector<8x4xf32>
    %24 = vector.multi_reduction <add>, %23, %cst_8 [2] : vector<8x4x128xf32> to vector<8x4xf32>
    %25 = vector.broadcast %20 : vector<8x1x128xf32> to vector<8x4x128xf32>
    %26 = arith.mulf %19, %25 : vector<8x4x128xf32>
    %cst_9 = arith.constant dense<0.000000e+00> : vector<8x4xf32>
    %27 = vector.multi_reduction <add>, %26, %cst_9 [2] : vector<8x4x128xf32> to vector<8x4xf32>
    %cst_10 = arith.constant 1.000000e+01 : f32
    %28 = vector.broadcast %cst_10 : f32 to vector<8x4xf32>
    %29 = arith.mulf %24, %28 : vector<8x4xf32>
    %30 = math.exp %29 : vector<8x4xf32>
    %cst_11 = arith.constant 1.000000e+01 : f32
    %31 = vector.broadcast %cst_11 : f32 to vector<8x4xf32>
    %32 = arith.mulf %27, %31 : vector<8x4xf32>
    %33 = math.exp %32 : vector<8x4xf32>
    %cst_12 = arith.constant dense<0.000000e+00> : vector<8xf32>
    %34 = vector.multi_reduction <add>, %33, %cst_12 [1] : vector<8x4xf32> to vector<8xf32>
    %35 = vector.shape_cast %34 : vector<8xf32> to vector<8x1xf32>
    %cst_13 = arith.constant dense<0.000000e+00> : vector<8xf32>
    %36 = vector.multi_reduction <add>, %30, %cst_13 [1] : vector<8x4xf32> to vector<8xf32>
    %37 = vector.shape_cast %36 : vector<8xf32> to vector<8x1xf32>
    %38 = arith.addf %35, %37 : vector<8x1xf32>
    %39 = vector.extract_strided_slice %30 {offsets = [0, 0], sizes = [8, 1], strides = [1, 1]} : vector<8x4xf32> to vector<8x1xf32>
    %40 = arith.subf %38, %39 : vector<8x1xf32>
    %41 = vector.extract_strided_slice %27 {offsets = [0, 0], sizes = [8, 1], strides = [1, 1]} : vector<8x4xf32> to vector<8x1xf32>
    %cst_14 = arith.constant 1.000000e+01 : f32
    %42 = vector.broadcast %cst_14 : f32 to vector<8x1xf32>
    %43 = arith.mulf %41, %42 : vector<8x1xf32>
    %44 = math.log %40 : vector<8x1xf32>
    %45 = arith.subf %44, %43 : vector<8x1xf32>
    %c0_15 = arith.constant 0 : index
    %c0_16 = arith.constant 0 : index
    %46 = vector.load %arg3[%c0_15, %c0_16] : memref<8x1xf32, #tpu.memory_space<vmem>>, vector<8x1xf32>
    tpu.vector_store %arg3[%c0_15, %c0_16], %45 {strides = array<i32>} : memref<8x1xf32, #tpu.memory_space<vmem>>, vector<8x1xf32>,
    return
  }
  func.func @transform_0(%arg0: i32) -> (i32, i32, i32) {
    %c0_i32 = arith.constant 0 : i32
    %c0_i32_0 = arith.constant 0 : i32
    %c0_i32_1 = arith.constant 0 : i32
    return %arg0, %c0_i32, %c0_i32_0 : i32, i32, i32
  }
  func.func @transform_1(%arg0: i32) -> (i32, i32, i32) {
    %c0_i32 = arith.constant 0 : i32
    %c0_i32_0 = arith.constant 0 : i32
    %c0_i32_1 = arith.constant 0 : i32
    return %arg0, %c0_i32, %c0_i32_0 : i32, i32, i32
  }
  func.func @transform_2(%arg0: i32) -> (i32, i32) {
    %c0_i32 = arith.constant 0 : i32
    %c0_i32_0 = arith.constant 0 : i32
    return %arg0, %c0_i32 : i32, i32
  }
}

</mosaic_0001>

<llo_original>
// kernel: tpu_custom_call.1
$region0: #{tpu_custom_call.1}
  #allocation0 [shape = 'u32[]', space=smem, size = 0x4, offset = 0x4, fixed_abs, tag = 'smem constant byte address 0x4 - core index']
  #allocation1 [shape = 'u32[144,128]{1,0:T(1,128)}', space=vmem, size = 0x12000, scoped, tag = 'internal scratch']
  %s0 = inlined_call_operand.hbm [shape: bf16[16,4,128], index: 0, kind: input, shape index: {}]
  %s1 = inlined_call_operand.hbm [shape: bf16[16,4,128], index: 1, kind: input, shape index: {}]
  %s2 = inlined_call_operand.vmem [shape: f32[16,1], index: 2, kind: output, shape index: {}]
  %s3 = sld [smem:[#allocation0]]
  $region49: #{tpu_custom_call.1} parent=0
    _
  %s5 = ssub.s32 1, %s3
  %s6 = scalar_select 0, %s5, %s3
  $region1: #{tpu_custom_call.1} parent=0
    #allocation2 [shape = 'u8[16384]{0}', space=vmem, size = 0x4000, scoped, tag = 'input window, operand 0']
    #allocation3 [shape = 's32[2]{0}', space=sflag, size = 0x8, scoped, tag = 'scoped memory for tpu_custom_call.1']
    #allocation4 [shape = 'u8[16384]{0}', space=vmem, size = 0x4000, scoped, tag = 'input window, operand 1']
    #allocation5 [shape = 's32[2]{0}', space=sflag, size = 0x8, scoped, tag = 'scoped memory for tpu_custom_call.1']
    %7 = vsyncpa [#allocation3], 0
    %s8 = scalar_lea.sflag [#allocation3], 1
    %9 = vsyncpa %s8, 0
    %10 = vsyncpa [#allocation5], 0
    %s11 = scalar_lea.sflag [#allocation5], 1
    %12 = vsyncpa %s11, 0
    loop: start=0, step=1, limit=4
    $region2: #{tpu_custom_call.1} parent=1 // loop_pre_header
      _
    $region3: #{tpu_custom_call.1} parent=1 // loop_header
      %s14 = sphi 0, %s18
      %p15 = scmp.ge.s32.totalorder %s14, 4
      %s24 = sphi 0, %s26
      %s27 = sphi 0, %s24
      %s28 = sphi 0, %s27
      %s44 = sphi 0, %s28
      %s50 = sphi 0, %s52
      %s53 = sphi 0, %s50
      %s54 = sphi 0, %s53
      %s70 = sphi 0, %s54
      %s76 = sphi 0, %s78
      %s79 = sphi 0, %s76
      %s80 = sphi 0, %s79
      %s96 = sphi 0, %s80
    $region4: #{tpu_custom_call.1} parent=1 // loop_header_branch
      %17 = sbr.rel (%p15) target = $region8
    $region5: #{tpu_custom_call.1} parent=1 // loop_body
      %s19 = ssub.s32 %s14, 1
      %s20 = ssub.s32 %s14, 2
      %s21 = sadd.s32 %s14, 1
      %s22 = ssub.s32 %s14, %s21
      %p23 = scmp.eq.s32.totalorder %s22, 0
      %s25 = sadd.s32 %s24, 1
      %s26 = scalar_select %p23, %s24, %s25
      %p29 = pneg %p23
      %p30 = scmp.eq.s32.totalorder %s14, 1
      %p31 = por %p29, %p30
      %p32 = scmp.ne.s32.totalorder %s24, %s27
      %p33 = scmp.eq.s32.totalorder %s14, 0
      %p34 = por %p32, %p33
      %p35 = scmp.ne.s32.totalorder %s24, %s27
      %p36 = scmp.eq.s32.totalorder %s19, 1
      %p37 = por %p35, %p36
      %p38 = scmp.ne.s32.totalorder %s27, %s28
      %p39 = scmp.eq.s32.totalorder %s19, 0
      %p40 = por %p38, %p39
      %p41 = scmp.ne.s32.totalorder %s27, %s28
      %p42 = scmp.eq.s32.totalorder %s20, 1
      %p43 = por %p41, %p42
      %p45 = scmp.ne.s32.totalorder %s28, %s44
      %p46 = scmp.eq.s32.totalorder %s20, 0
      %p47 = por %p45, %p46
      %s48 = ssub.s32 %s14, %s21
      %p49 = scmp.eq.s32.totalorder %s48, 0
      %s51 = sadd.s32 %s50, 1
      %s52 = scalar_select %p49, %s50, %s51
      %p55 = pneg %p49
      %p56 = scmp.eq.s32.totalorder %s14, 1
      %p57 = por %p55, %p56
      %p58 = scmp.ne.s32.totalorder %s50, %s53
      %p59 = scmp.eq.s32.totalorder %s14, 0
      %p60 = por %p58, %p59
      %p61 = scmp.ne.s32.totalorder %s50, %s53
      %p62 = scmp.eq.s32.totalorder %s19, 1
      %p63 = por %p61, %p62
      %p64 = scmp.ne.s32.totalorder %s53, %s54
      %p65 = scmp.eq.s32.totalorder %s19, 0
      %p66 = por %p64, %p65
      %p67 = scmp.ne.s32.totalorder %s53, %s54
      %p68 = scmp.eq.s32.totalorder %s20, 1
      %p69 = por %p67, %p68
      %p71 = scmp.ne.s32.totalorder %s54, %s70
      %p72 = scmp.eq.s32.totalorder %s20, 0
      %p73 = por %p71, %p72
      %s74 = ssub.s32 %s14, %s21
      %p75 = scmp.eq.s32.totalorder %s74, 0
      %s77 = sadd.s32 %s76, 1
      %s78 = scalar_select %p75, %s76, %s77
      %p81 = pneg %p75
      %p82 = scmp.eq.s32.totalorder %s14, 1
      %p83 = por %p81, %p82
      %p84 = scmp.ne.s32.totalorder %s76, %s79
      %p85 = scmp.eq.s32.totalorder %s14, 0
      %p86 = por %p84, %p85
      %p87 = scmp.ne.s32.totalorder %s76, %s79
      %p88 = scmp.eq.s32.totalorder %s19, 1
      %p89 = por %p87, %p88
      %p90 = scmp.ne.s32.totalorder %s79, %s80
      %p91 = scmp.eq.s32.totalorder %s19, 0
      %p92 = por %p90, %p91
      %p93 = scmp.ne.s32.totalorder %s79, %s80
      %p94 = scmp.eq.s32.totalorder %s20, 1
      %p95 = por %p93, %p94
      %p97 = scmp.ne.s32.totalorder %s80, %s96
      %p98 = scmp.eq.s32.totalorder %s20, 0
      %p99 = por %p97, %p98
      %p100 = scmp.le.s32.totalorder 1, %s14
      %p101 = scmp.lt.s32.totalorder %s14, 3
      %p102 = pnand %p100, %p101
      %p103 = pneg %p102
      // Predicated region
      $region9: #{tpu_custom_call.1} parent=5 // pred_check
        _
      $region10: #{tpu_custom_call.1} parent=5 // pred_check_branch
        %105 = sbr.rel (%p102) target = $region12
      $region11: #{tpu_custom_call.1} parent=5 // pred_region
        %s106 = ssub.s32 %s14, 1
      $region12: #{tpu_custom_call.1} parent=5 // pred_fallthru
        _
      %p107 = scmp.lt.s32.totalorder %s14, 2
      // Predicated region
      $region13: #{tpu_custom_call.1} parent=5 // pred_check
        %p108 = pneg %p107
      $region14: #{tpu_custom_call.1} parent=5 // pred_check_branch
        %110 = sbr.rel (%p108) target = $region16
      $region15: #{tpu_custom_call.1} parent=5 // pred_region
        // Predicated region
        $region17: #{tpu_custom_call.1} parent=15 // pred_check
          %p111 = pneg %p34
        $region18: #{tpu_custom_call.1} parent=15 // pred_check_branch
          %113 = sbr.rel (%p111) target = $region20
        $region19: #{tpu_custom_call.1} parent=15 // pred_region
          %s114 = sand.u32 %s24, 1
          %s115 = scalar_lea.sflag [#allocation3], %s114
          %s116 = sand.u32 %s24, 1
          %s117 = smul.addr %s116, 16
          %s118 = scalar_lea.vmem [#allocation2], %s117
          %s119 = smul.u32 8, %s14
          %s121 = ssub.s32 256, 256
          %122 = vsyncadd %s115, %s121
          %s123 = smul.addr %s119, 32
          %s124 = scalar_lea.hbm %s0, %s123
          %s125 = sshll.u32 %s118, 4
          %s126 = int_to_ptr.vmem [resolvable:$true] %s125
          %131 = dma.hbm_to_vmem [thread:$0]  %s124, 256, %s126, %s115, 32, 32, 2
        $region20: #{tpu_custom_call.1} parent=15 // pred_fallthru
          _
        // Predicated region
        $region21: #{tpu_custom_call.1} parent=15 // pred_check
          %p132 = pneg %p60
        $region22: #{tpu_custom_call.1} parent=15 // pred_check_branch
          %134 = sbr.rel (%p132) target = $region24
        $region23: #{tpu_custom_call.1} parent=15 // pred_region
          %s135 = sand.u32 %s50, 1
          %s136 = scalar_lea.sflag [#allocation5], %s135
          %s137 = sand.u32 %s50, 1
          %s138 = smul.addr %s137, 16
          %s139 = scalar_lea.vmem [#allocation4], %s138
          %s140 = smul.u32 8, %s14
          %s142 = ssub.s32 256, 256
          %143 = vsyncadd %s136, %s142
          %s144 = smul.addr %s140, 32
          %s145 = scalar_lea.hbm %s1, %s144
          %s146 = sshll.u32 %s139, 4
          %s147 = int_to_ptr.vmem [resolvable:$true] %s146
          %152 = dma.hbm_to_vmem [thread:$0]  %s145, 256, %s147, %s136, 32, 32, 2
        $region24: #{tpu_custom_call.1} parent=15 // pred_fallthru
          _
      $region16: #{tpu_custom_call.1} parent=5 // pred_fallthru
        _
      %p153 = scmp.le.s32.totalorder 1, %s14
      %p154 = scmp.lt.s32.totalorder %s14, 3
      %p155 = pnand %p153, %p154
      %p156 = pneg %p155
      // Predicated region
      $region25: #{tpu_custom_call.1} parent=5 // pred_check
        _
      $region26: #{tpu_custom_call.1} parent=5 // pred_check_branch
        %158 = sbr.rel (%p155) target = $region28
      $region27: #{tpu_custom_call.1} parent=5 // pred_region
        %s159 = ssub.s32 %s14, 1
        %s160 = sand.u32 %s27, 1
        %s161 = scalar_lea.sflag [#allocation3], %s160
        %s162 = sand.u32 %s27, 1
        %s163 = smul.addr %s162, 16
        %s164 = scalar_lea.vmem [#allocation2], %s163
        // Predicated region
        $region29: #{tpu_custom_call.1} parent=27 // pred_check
          %p165 = pneg %p40
        $region30: #{tpu_custom_call.1} parent=27 // pred_check_branch
          %167 = sbr.rel (%p165) target = $region32
        $region31: #{tpu_custom_call.1} parent=27 // pred_region
          %168 = dma.done %s161, 256
        $region32: #{tpu_custom_call.1} parent=27 // pred_fallthru
          _
        %s169 = sand.u32 %s53, 1
        %s170 = scalar_lea.sflag [#allocation5], %s169
        %s171 = sand.u32 %s53, 1
        %s172 = smul.addr %s171, 16
        %s173 = scalar_lea.vmem [#allocation4], %s172
        // Predicated region
        $region33: #{tpu_custom_call.1} parent=27 // pred_check
          %p174 = pneg %p66
        $region34: #{tpu_custom_call.1} parent=27 // pred_check_branch
          %176 = sbr.rel (%p174) target = $region36
        $region35: #{tpu_custom_call.1} parent=27 // pred_region
          %177 = dma.done %s170, 256
        $region36: #{tpu_custom_call.1} parent=27 // pred_fallthru
          _
        %s178 = sand.u32 %s27, 1
        %s179 = scalar_lea.sflag [#allocation3], %s178
        %s180 = sand.u32 %s27, 1
        %s181 = smul.addr %s180, 16
        %s182 = scalar_lea.vmem [#allocation2], %s181
        %p183 = pneg %p40
        %p184 = pneg %p37
        %s185 = sand.u32 %s53, 1
        %s186 = scalar_lea.sflag [#allocation5], %s185
        %s187 = sand.u32 %s53, 1
        %s188 = smul.addr %s187, 16
        %s189 = scalar_lea.vmem [#allocation4], %s188
        %p190 = pneg %p66
        %p191 = pneg %p63
        %p192 = pneg %p92
        %p193 = pneg %p89
        %p194 = scmp.lt.s32.totalorder %s19, 1
        %s195 = scalar_select %p194, %s19, 1
        %s196 = smul.addr %s195, 8
        %s197 = scalar_lea.vmem %s2, %s196
        %s198 = smul.u32 8, %s19
        %s199 = smul.u32 8, %s19
        %p200 = scmp.lt.s32.totalorder %s19, 1
        %s201 = scalar_select %p200, %s19, 1
        %s202 = smul.addr %s201, 8
        %s203 = scalar_lea.vmem %s2, %s202
        %v204 = vld [vmem:[%s164] sm:$0x3]
        %v205 = vld [vmem:[%s164 + $0x2] sm:$0x3]
        %v206 = vld [vmem:[%s164 + $0x4] sm:$0x3]
        %v207 = vld [vmem:[%s164 + $0x6] sm:$0x3]
        %v208 = vld [vmem:[%s164 + $0x8] sm:$0x3]
        %v209 = vld [vmem:[%s164 + $0xa] sm:$0x3]
        %v210 = vld [vmem:[%s164 + $0xc] sm:$0x3]
        %v211 = vld [vmem:[%s164 + $0xe] sm:$0x3]
        %v212 = vunpack.c.l.bf16 %v204
        %v213 = vunpack.c.l.bf16 %v205
        %v214 = vunpack.c.l.bf16 %v206
        %v215 = vunpack.c.l.bf16 %v207
        %v216 = vunpack.c.l.bf16 %v208
        %v217 = vunpack.c.l.bf16 %v209
        %v218 = vunpack.c.l.bf16 %v210
        %v219 = vunpack.c.l.bf16 %v211
        %v220 = vld [vmem:[%s173] sm:$0x3]
        %v221 = vld [vmem:[%s173 + $0x2] sm:$0x3]
        %v222 = vld [vmem:[%s173 + $0x4] sm:$0x3]
        %v223 = vld [vmem:[%s173 + $0x6] sm:$0x3]
        %v224 = vld [vmem:[%s173 + $0x8] sm:$0x3]
        %v225 = vld [vmem:[%s173 + $0xa] sm:$0x3]
        %v226 = vld [vmem:[%s173 + $0xc] sm:$0x3]
        %v227 = vld [vmem:[%s173 + $0xe] sm:$0x3]
        %v228 = vunpack.c.l.bf16 %v220
        %v229 = vunpack.c.l.bf16 %v221
        %v230 = vunpack.c.l.bf16 %v222
        %v231 = vunpack.c.l.bf16 %v223
        %v232 = vunpack.c.l.bf16 %v224
        %v233 = vunpack.c.l.bf16 %v225
        %v234 = vunpack.c.l.bf16 %v226
        %v235 = vunpack.c.l.bf16 %v227
        %v236 = vmul.f32 %v212, %v212
        %v237 = vmul.f32 %v213, %v213
        %v238 = vmul.f32 %v214, %v214
        %v239 = vmul.f32 %v215, %v215
        %v240 = vmul.f32 %v216, %v216
        %v241 = vmul.f32 %v217, %v217
        %v242 = vmul.f32 %v218, %v218
        %v243 = vmul.f32 %v219, %v219
        %vm244 = vcmask 1043456
        %v245 = vsel %vm244, %v236, 0.0
        %246 = vadd.xlane.f32.xlu0 %v245
        %v247 = vpop.xlane.xlu0 %246
        %v248 = vsel %vm244, %v237, 0.0
        %249 = vadd.xlane.f32.xlu0 %v248
        %v250 = vpop.xlane.xlu0 %249
        %v251 = vsel %vm244, %v238, 0.0
        %252 = vadd.xlane.f32.xlu0 %v251
        %v253 = vpop.xlane.xlu0 %252
        %v254 = vsel %vm244, %v239, 0.0
        %255 = vadd.xlane.f32.xlu0 %v254
        %v256 = vpop.xlane.xlu0 %255
        %v257 = vsel %vm244, %v240, 0.0
        %258 = vadd.xlane.f32.xlu0 %v257
        %v259 = vpop.xlane.xlu0 %258
        %v260 = vsel %vm244, %v241, 0.0
        %261 = vadd.xlane.f32.xlu0 %v260
        %v262 = vpop.xlane.xlu0 %261
        %v263 = vsel %vm244, %v242, 0.0
        %264 = vadd.xlane.f32.xlu0 %v263
        %v265 = vpop.xlane.xlu0 %264
        %v266 = vsel %vm244, %v243, 0.0
        %267 = vadd.xlane.f32.xlu0 %v266
        %v268 = vpop.xlane.xlu0 %267
        %v269 = vadd.f32 %v247, 1e-18
        %v270 = vadd.f32 %v250, 1e-18
        %v271 = vadd.f32 %v253, 1e-18
        %v272 = vadd.f32 %v256, 1e-18
        %v273 = vadd.f32 %v259, 1e-18
        %v274 = vadd.f32 %v262, 1e-18
        %v275 = vadd.f32 %v265, 1e-18
        %v276 = vadd.f32 %v268, 1e-18
        %v277 = vrsqrt.pop %v269
        %v278 = vrsqrt.pop %v270
        %v279 = vrsqrt.pop %v271
        %v280 = vrsqrt.pop %v272
        %v281 = vrsqrt.pop %v273
        %v282 = vrsqrt.pop %v274
        %v283 = vrsqrt.pop %v275
        %v284 = vrsqrt.pop %v276
        %v285 = vmul.f32 %v212, %v277
        %v286 = vmul.f32 %v213, %v278
        %v287 = vmul.f32 %v214, %v279
        %v288 = vmul.f32 %v215, %v280
        %v289 = vmul.f32 %v216, %v281
        %v290 = vmul.f32 %v217, %v282
        %v291 = vmul.f32 %v218, %v283
        %v292 = vmul.f32 %v219, %v284
        %v293 = vmul.f32 %v228, %v228
        %v294 = vmul.f32 %v229, %v229
        %v295 = vmul.f32 %v230, %v230
        %v296 = vmul.f32 %v231, %v231
        %v297 = vmul.f32 %v232, %v232
        %v298 = vmul.f32 %v233, %v233
        %v299 = vmul.f32 %v234, %v234
        %v300 = vmul.f32 %v235, %v235
        %v301 = vsel %vm244, %v293, 0.0
        %302 = vadd.xlane.f32.xlu0 %v301
        %v303 = vpop.xlane.xlu0 %302
        %v304 = vsel %vm244, %v294, 0.0
        %305 = vadd.xlane.f32.xlu0 %v304
        %v306 = vpop.xlane.xlu0 %305
        %v307 = vsel %vm244, %v295, 0.0
        %308 = vadd.xlane.f32.xlu0 %v307
        %v309 = vpop.xlane.xlu0 %308
        %v310 = vsel %vm244, %v296, 0.0
        %311 = vadd.xlane.f32.xlu0 %v310
        %v312 = vpop.xlane.xlu0 %311
        %v313 = vsel %vm244, %v297, 0.0
        %314 = vadd.xlane.f32.xlu0 %v313
        %v315 = vpop.xlane.xlu0 %314
        %v316 = vsel %vm244, %v298, 0.0
        %317 = vadd.xlane.f32.xlu0 %v316
        %v318 = vpop.xlane.xlu0 %317
        %v319 = vsel %vm244, %v299, 0.0
        %320 = vadd.xlane.f32.xlu0 %v319
        %v321 = vpop.xlane.xlu0 %320
        %v322 = vsel %vm244, %v300, 0.0
        %323 = vadd.xlane.f32.xlu0 %v322
        %v324 = vpop.xlane.xlu0 %323
        %v325 = vadd.f32 %v303, 1e-18
        %v326 = vadd.f32 %v306, 1e-18
        %v327 = vadd.f32 %v309, 1e-18
        %v328 = vadd.f32 %v312, 1e-18
        %v329 = vadd.f32 %v315, 1e-18
        %v330 = vadd.f32 %v318, 1e-18
        %v331 = vadd.f32 %v321, 1e-18
        %v332 = vadd.f32 %v324, 1e-18
        %v333 = vrsqrt.pop %v325
        %v334 = vrsqrt.pop %v326
        %v335 = vrsqrt.pop %v327
        %v336 = vrsqrt.pop %v328
        %v337 = vrsqrt.pop %v329
        %v338 = vrsqrt.pop %v330
        %v339 = vrsqrt.pop %v331
        %v340 = vrsqrt.pop %v332
        %v341 = vmul.f32 %v228, %v333
        %v342 = vmul.f32 %v229, %v334
        %v343 = vmul.f32 %v230, %v335
        %v344 = vmul.f32 %v231, %v336
        %v345 = vmul.f32 %v232, %v337
        %v346 = vmul.f32 %v233, %v338
        %v347 = vmul.f32 %v234, %v339
        %v348 = vmul.f32 %v235, %v340
        %v349 = vlaneseq
        %v350 = vshrl.u32 %v349, 7
        %v351 = vsub.s32 0, %v350
        %v352 = vrot.slane %v341, %v351
        %v353 = vlaneseq
        %v354 = vshrl.u32 %v353, 7
        %v355 = vsub.s32 0, %v354
        %v356 = vrot.slane %v342, %v355
        %v357 = vlaneseq
        %v358 = vshrl.u32 %v357, 7
        %v359 = vsub.s32 0, %v358
        %v360 = vrot.slane %v343, %v359
        %v361 = vlaneseq
        %v362 = vshrl.u32 %v361, 7
        %v363 = vsub.s32 0, %v362
        %v364 = vrot.slane %v344, %v363
        %v365 = vlaneseq
        %v366 = vshrl.u32 %v365, 7
        %v367 = vsub.s32 0, %v366
        %v368 = vrot.slane %v345, %v367
        %v369 = vlaneseq
        %v370 = vshrl.u32 %v369, 7
        %v371 = vsub.s32 0, %v370
        %v372 = vrot.slane %v346, %v371
        %v373 = vlaneseq
        %v374 = vshrl.u32 %v373, 7
        %v375 = vsub.s32 0, %v374
        %v376 = vrot.slane %v347, %v375
        %v377 = vlaneseq
        %v378 = vshrl.u32 %v377, 7
        %v379 = vsub.s32 0, %v378
        %v380 = vrot.slane %v348, %v379
        %v381 = vmul.f32 %v285, %v352
        %v382 = vmul.f32 %v286, %v356
        %v383 = vmul.f32 %v287, %v360
        %v384 = vmul.f32 %v288, %v364
        %v385 = vmul.f32 %v289, %v368
        %v386 = vmul.f32 %v290, %v372
        %v387 = vmul.f32 %v291, %v376
        %v388 = vmul.f32 %v292, %v380
        %v389 = vsel %vm244, %v381, 0.0
        %390 = vadd.xlane.f32.xlu0 %v389
        %v391 = vpop.xlane.xlu0 %390
        %v392 = vsel %vm244, %v382, 0.0
        %393 = vadd.xlane.f32.xlu0 %v392
        %v394 = vpop.xlane.xlu0 %393
        %v395 = vsel %vm244, %v383, 0.0
        %396 = vadd.xlane.f32.xlu0 %v395
        %v397 = vpop.xlane.xlu0 %396
        %v398 = vsel %vm244, %v384, 0.0
        %399 = vadd.xlane.f32.xlu0 %v398
        %v400 = vpop.xlane.xlu0 %399
        %v401 = vsel %vm244, %v385, 0.0
        %402 = vadd.xlane.f32.xlu0 %v401
        %v403 = vpop.xlane.xlu0 %402
        %v404 = vsel %vm244, %v386, 0.0
        %405 = vadd.xlane.f32.xlu0 %v404
        %v406 = vpop.xlane.xlu0 %405
        %v407 = vsel %vm244, %v387, 0.0
        %408 = vadd.xlane.f32.xlu0 %v407
        %v409 = vpop.xlane.xlu0 %408
        %v410 = vsel %vm244, %v388, 0.0
        %411 = vadd.xlane.f32.xlu0 %v410
        %v412 = vpop.xlane.xlu0 %411
        %v413 = vlaneseq
        %v414 = vshrl.u32 %v413, 7
        %v415 = vsub.s32 0, %v414
        %v416 = vrot.slane %v285, %v415
        %v417 = vlaneseq
        %v418 = vshrl.u32 %v417, 7
        %v419 = vsub.s32 0, %v418
        %v420 = vrot.slane %v286, %v419
        %v421 = vlaneseq
        %v422 = vshrl.u32 %v421, 7
        %v423 = vsub.s32 0, %v422
        %v424 = vrot.slane %v287, %v423
        %v425 = vlaneseq
        %v426 = vshrl.u32 %v425, 7
        %v427 = vsub.s32 0, %v426
        %v428 = vrot.slane %v288, %v427
        %v429 = vlaneseq
        %v430 = vshrl.u32 %v429, 7
        %v431 = vsub.s32 0, %v430
        %v432 = vrot.slane %v289, %v431
        %v433 = vlaneseq
        %v434 = vshrl.u32 %v433, 7
        %v435 = vsub.s32 0, %v434
        %v436 = vrot.slane %v290, %v435
        %v437 = vlaneseq
        %v438 = vshrl.u32 %v437, 7
        %v439 = vsub.s32 0, %v438
        %v440 = vrot.slane %v291, %v439
        %v441 = vlaneseq
        %v442 = vshrl.u32 %v441, 7
        %v443 = vsub.s32 0, %v442
        %v444 = vrot.slane %v292, %v443
        %v445 = vmul.f32 %v341, %v416
        %v446 = vmul.f32 %v342, %v420
        %v447 = vmul.f32 %v343, %v424
        %v448 = vmul.f32 %v344, %v428
        %v449 = vmul.f32 %v345, %v432
        %v450 = vmul.f32 %v346, %v436
        %v451 = vmul.f32 %v347, %v440
        %v452 = vmul.f32 %v348, %v444
        %v453 = vsel %vm244, %v445, 0.0
        %454 = vadd.xlane.f32.xlu0 %v453
        %v455 = vpop.xlane.xlu0 %454
        %v456 = vsel %vm244, %v446, 0.0
        %457 = vadd.xlane.f32.xlu0 %v456
        %v458 = vpop.xlane.xlu0 %457
        %v459 = vsel %vm244, %v447, 0.0
        %460 = vadd.xlane.f32.xlu0 %v459
        %v461 = vpop.xlane.xlu0 %460
        %v462 = vsel %vm244, %v448, 0.0
        %463 = vadd.xlane.f32.xlu0 %v462
        %v464 = vpop.xlane.xlu0 %463
        %v465 = vsel %vm244, %v449, 0.0
        %466 = vadd.xlane.f32.xlu0 %v465
        %v467 = vpop.xlane.xlu0 %466
        %v468 = vsel %vm244, %v450, 0.0
        %469 = vadd.xlane.f32.xlu0 %v468
        %v470 = vpop.xlane.xlu0 %469
        %v471 = vsel %vm244, %v451, 0.0
        %472 = vadd.xlane.f32.xlu0 %v471
        %v473 = vpop.xlane.xlu0 %472
        %v474 = vsel %vm244, %v452, 0.0
        %475 = vadd.xlane.f32.xlu0 %v474
        %v476 = vpop.xlane.xlu0 %475
        %v477 = vmul.f32 %v391, 10.0
        %v478 = vmul.f32 %v394, 10.0
        %v479 = vmul.f32 %v397, 10.0
        %v480 = vmul.f32 %v400, 10.0
        %v481 = vmul.f32 %v403, 10.0
        %v482 = vmul.f32 %v406, 10.0
        %v483 = vmul.f32 %v409, 10.0
        %v484 = vmul.f32 %v412, 10.0
        %v485 = vmul.f32 %v477, 1.442695
        %v486 = vpow.pop %v485
        %v487 = vmul.f32 %v478, 1.442695
        %v488 = vpow.pop %v487
        %v489 = vmul.f32 %v479, 1.442695
        %v490 = vpow.pop %v489
        %v491 = vmul.f32 %v480, 1.442695
        %v492 = vpow.pop %v491
        %v493 = vmul.f32 %v481, 1.442695
        %v494 = vpow.pop %v493
        %v495 = vmul.f32 %v482, 1.442695
        %v496 = vpow.pop %v495
        %v497 = vmul.f32 %v483, 1.442695
        %v498 = vpow.pop %v497
        %v499 = vmul.f32 %v484, 1.442695
        %v500 = vpow.pop %v499
        %v501 = vmul.f32 %v455, 10.0
        %v502 = vmul.f32 %v458, 10.0
        %v503 = vmul.f32 %v461, 10.0
        %v504 = vmul.f32 %v464, 10.0
        %v505 = vmul.f32 %v467, 10.0
        %v506 = vmul.f32 %v470, 10.0
        %v507 = vmul.f32 %v473, 10.0
        %v508 = vmul.f32 %v476, 10.0
        %v509 = vmul.f32 %v501, 1.442695
        %v510 = vpow.pop %v509
        %v511 = vmul.f32 %v502, 1.442695
        %v512 = vpow.pop %v511
        %v513 = vmul.f32 %v503, 1.442695
        %v514 = vpow.pop %v513
        %v515 = vmul.f32 %v504, 1.442695
        %v516 = vpow.pop %v515
        %v517 = vmul.f32 %v505, 1.442695
        %v518 = vpow.pop %v517
        %v519 = vmul.f32 %v506, 1.442695
        %v520 = vpow.pop %v519
        %v521 = vmul.f32 %v507, 1.442695
        %v522 = vpow.pop %v521
        %v523 = vmul.f32 %v508, 1.442695
        %v524 = vpow.pop %v523
        %v533 = vlaneseq
        %v534 = vand.u32 %v533, 127
        %v535 = vlaneseq
        %v536 = vshrl.u32 %v535, 7
        %v537 = vsub.s32 %v534, %v536
        %v538 = vrot.slane %v510, %v537
        %v539 = vlaneseq
        %v540 = vshrl.u32 %v539, 7
        %v541 = vsub.s32 %v534, %v540
        %v542 = vrot.slane %v512, %v541
        %v543 = vlaneseq
        %v544 = vshrl.u32 %v543, 7
        %v545 = vsub.s32 %v534, %v544
        %v546 = vrot.slane %v514, %v545
        %v547 = vlaneseq
        %v548 = vshrl.u32 %v547, 7
        %v549 = vsub.s32 %v534, %v548
        %v550 = vrot.slane %v516, %v549
        %v551 = vlaneseq
        %v552 = vshrl.u32 %v551, 7
        %v553 = vsub.s32 %v534, %v552
        %v554 = vrot.slane %v518, %v553
        %v555 = vlaneseq
        %v556 = vshrl.u32 %v555, 7
        %v557 = vsub.s32 %v534, %v556
        %v558 = vrot.slane %v520, %v557
        %v559 = vlaneseq
        %v560 = vshrl.u32 %v559, 7
        %v561 = vsub.s32 %v534, %v560
        %v562 = vrot.slane %v522, %v561
        %v563 = vlaneseq
        %v564 = vshrl.u32 %v563, 7
        %v565 = vsub.s32 %v534, %v564
        %v566 = vrot.slane %v524, %v565
        %vm567 = vcmask 1041409
        %v568 = vsel %vm567, %v542, %v538
        %vm569 = vcmask 1042434
        %v570 = vsel %vm569, %v546, %v568
        %vm571 = vcmask 1043459
        %v572 = vsel %vm571, %v550, %v570
        %vm573 = vcmask 1044484
        %v574 = vsel %vm573, %v554, %v572
        %vm575 = vcmask 1045509
        %v576 = vsel %vm575, %v558, %v574
        %vm577 = vcmask 1046534
        %v578 = vsel %vm577, %v562, %v576
        %vm579 = vcmask 1047559
        %v580 = vsel %vm579, %v566, %v578
        %vm582 = vcmask 31744
        %v583 = vsel %vm582, %v580, 0.0
        %584 = vadd.xlane.f32.xlu0 %v583
        %v585 = vpop.xlane.xlu0 %584
        %v594 = vlaneseq
        %v595 = vshrl.u32 %v594, 7
        %v596 = vsub.s32 %v534, %v595
        %v597 = vrot.slane %v486, %v596
        %v598 = vlaneseq
        %v599 = vshrl.u32 %v598, 7
        %v600 = vsub.s32 %v534, %v599
        %v601 = vrot.slane %v488, %v600
        %v602 = vlaneseq
        %v603 = vshrl.u32 %v602, 7
        %v604 = vsub.s32 %v534, %v603
        %v605 = vrot.slane %v490, %v604
        %v606 = vlaneseq
        %v607 = vshrl.u32 %v606, 7
        %v608 = vsub.s32 %v534, %v607
        %v609 = vrot.slane %v492, %v608
        %v610 = vlaneseq
        %v611 = vshrl.u32 %v610, 7
        %v612 = vsub.s32 %v534, %v611
        %v613 = vrot.slane %v494, %v612
        %v614 = vlaneseq
        %v615 = vshrl.u32 %v614, 7
        %v616 = vsub.s32 %v534, %v615
        %v617 = vrot.slane %v496, %v616
        %v618 = vlaneseq
        %v619 = vshrl.u32 %v618, 7
        %v620 = vsub.s32 %v534, %v619
        %v621 = vrot.slane %v498, %v620
        %v622 = vlaneseq
        %v623 = vshrl.u32 %v622, 7
        %v624 = vsub.s32 %v534, %v623
        %v625 = vrot.slane %v500, %v624
        %v626 = vsel %vm567, %v601, %v597
        %v627 = vsel %vm569, %v605, %v626
        %v628 = vsel %vm571, %v609, %v627
        %v629 = vsel %vm573, %v613, %v628
        %v630 = vsel %vm575, %v617, %v629
        %v631 = vsel %vm577, %v621, %v630
        %v632 = vsel %vm579, %v625, %v631
        %v634 = vsel %vm582, %v632, 0.0
        %635 = vadd.xlane.f32.xlu0 %v634
        %v636 = vpop.xlane.xlu0 %635
        %v637 = vadd.f32 %v585, %v636
        %v638 = vrot.slane %v488, 7
        %v639 = vsel %vm567, %v638, %v486
        %v640 = vrot.slane %v490, 6
        %v641 = vsel %vm569, %v640, %v639
        %v642 = vrot.slane %v492, 5
        %v643 = vsel %vm571, %v642, %v641
        %v644 = vrot.slane %v494, 4
        %v645 = vsel %vm573, %v644, %v643
        %v646 = vrot.slane %v496, 3
        %v647 = vsel %vm575, %v646, %v645
        %v648 = vrot.slane %v498, 2
        %v649 = vsel %vm577, %v648, %v647
        %v650 = vrot.slane %v500, 1
        %v651 = vsel %vm579, %v650, %v649
        %v653 = vsub.f32 %v637, %v651
        %v654 = vlog2.pop %v653
        %v655 = vmul.f32 %v654, 0.6931472
        %v664 = vrot.slane %v502, 7
        %v665 = vsel %vm567, %v664, %v501
        %v666 = vrot.slane %v503, 6
        %v667 = vsel %vm569, %v666, %v665
        %v668 = vrot.slane %v504, 5
        %v669 = vsel %vm571, %v668, %v667
        %v670 = vrot.slane %v505, 4
        %v671 = vsel %vm573, %v670, %v669
        %v672 = vrot.slane %v506, 3
        %v673 = vsel %vm575, %v672, %v671
        %v674 = vrot.slane %v507, 2
        %v675 = vsel %vm577, %v674, %v673
        %v676 = vrot.slane %v508, 1
        %v677 = vsel %vm579, %v676, %v675
        %v679 = vsub.f32 %v655, %v677
        %vm680 = vcmask 7168
        %681 = vst.msk [vmem:[%s203] sm:$0xff] %vm680, %v679
        %p682 = scmp.lt.s32.totalorder %s19, 1
        %s683 = scalar_select %p682, %s19, 1
        %s684 = smul.addr %s683, 8
        %s685 = scalar_lea.vmem %s2, %s684
        // Predicated region
        $region37: #{tpu_custom_call.1} parent=27 // pred_check
          %p686 = pneg %p89
        $region38: #{tpu_custom_call.1} parent=27 // pred_check_branch
          %688 = sbr.rel (%p686) target = $region40
        $region39: #{tpu_custom_call.1} parent=27 // pred_region
          _
        $region40: #{tpu_custom_call.1} parent=27 // pred_fallthru
          _
      $region28: #{tpu_custom_call.1} parent=5 // pred_fallthru
        _
      %p689 = scmp.le.s32.totalorder 2, %s14
      // Predicated region
      $region41: #{tpu_custom_call.1} parent=5 // pred_check
        %p690 = pneg %p689
      $region42: #{tpu_custom_call.1} parent=5 // pred_check_branch
        %692 = sbr.rel (%p690) target = $region44
      $region43: #{tpu_custom_call.1} parent=5 // pred_region
        %s693 = ssub.s32 %s14, 2
        // Predicated region
        $region45: #{tpu_custom_call.1} parent=43 // pred_check
          %p694 = pneg %p95
        $region46: #{tpu_custom_call.1} parent=43 // pred_check_branch
          %696 = sbr.rel (%p694) target = $region48
        $region47: #{tpu_custom_call.1} parent=43 // pred_region
          %p697 = scmp.lt.s32.totalorder %s20, 1
          %s698 = scalar_select %p697, %s20, 1
          %s699 = smul.addr %s698, 8
          %s700 = scalar_lea.vmem %s2, %s699
        $region48: #{tpu_custom_call.1} parent=43 // pred_fallthru
          _
      $region44: #{tpu_custom_call.1} parent=5 // pred_fallthru
        _
    $region6: #{tpu_custom_call.1} parent=1 // loop_footer
      %s18 = sadd.s32 1, %s14
    $region7: #{tpu_custom_call.1} parent=1 // loop_footer_branch
      %13 = sbr.rel target = $region3
    $region8: #{tpu_custom_call.1} parent=1 // loop_exit
      _
    %701 = vsyncpa [#allocation3], 1
    %s702 = scalar_lea.sflag [#allocation3], 1
    %703 = vsyncpa %s702, 1
    %704 = vsyncpa [#allocation5], 1
    %s705 = scalar_lea.sflag [#allocation5], 1
    %706 = vsyncpa %s705, 1

</llo_original>
